<compile_context>
chip_gen: v7x
topology: tpu7x:2x2x1
jax: 0.10.0
libtpu: 0.0.40
codegen_flags: <defaults>
</compile_context>

<pallas_src>
import jax
import jax.numpy as jnp
from jax.experimental import pallas as pl
from jax.experimental.pallas import tpu as pltpu

# ---- problem sizes (small, consistent with the module's forward) ----------
B = 2          # batch
C = 3          # image channels (resnet50 input is RGB)
H = W = 16     # spatial
HW = H * W
FEAT_DIM = 32  # stand-in for feat_extractor.num_features (2048 in resnet50)

# packed parameter slab layout (f32 [8, 128], zero padded past FEAT_DIM):
#   row 0..2 : wproj[c, :]  (already scaled by 1/(H*W))
#   row 3    : bproj
#   row 4    : wfc (fc weight as a lane-major row)
#   rows 5-7 : unused (zeros)
ROW_WPROJ = 0
ROW_BPROJ = 3
ROW_WFC = 4


def baseline_kernel(img_ref, w_ref, bfc_ref, out_ref):
    img = img_ref[...]                       # [B, C*H*W]  (lane-dense)
    w = w_ref[...]                           # [8, 128]    packed params

    # ------- backbone stand-in: GAP + linear projection (VPU FMAs only) ----
    # feat[b, :] = sum_c gap[b, c] * wproj[c, :] + bproj
    # (1/(H*W) already folded into wproj rows; padded lanes are zeros.)
    feat = w[ROW_BPROJ:ROW_BPROJ + 1, :]     # [1, 128] -> broadcasts to [B, 128]
    for c in range(C):
        gap_c = jnp.sum(img[:, c * HW:(c + 1) * HW], axis=-1, keepdims=True)  # [B, 1]
        feat = feat + gap_c * w[ROW_WPROJ + c:ROW_WPROJ + c + 1, :]           # [B, 128]

    # ------- Dropout (identity in eval) + Linear(FEAT_DIM, 1) --------------
    # Lane reduce over the full 128 lanes is exact: lanes >= FEAT_DIM are 0
    # in both feat (zero-padded weights/bias) and wfc.
    y = jnp.sum(feat * w[ROW_WFC:ROW_WFC + 1, :], axis=-1, keepdims=True)     # [B, 1]
    y = y + bfc_ref[0]                        # scalar bias from SMEM

    # ------- loss == 'BCE' head (module default): sigmoid ------------------
    out_ref[...] = jnp.broadcast_to(jax.nn.sigmoid(y), out_ref.shape)         # [B, 128]


def baseline_forward(img_nchw, packed_w, bfc):
    """img_nchw: [B, C, H, W] f32; packed_w: [8, 128] f32; bfc: [1] f32."""
    b, c, h, w = img_nchw.shape
    img = img_nchw.reshape(b, c * h * w)     # glue reshape in plain JAX

    out_wide = pl.pallas_call(
        baseline_kernel,
        out_shape=jax.ShapeDtypeStruct((b, 128), jnp.float32),
        in_specs=[
            pl.BlockSpec(memory_space=pltpu.MemorySpace.VMEM),   # image slab
            pl.BlockSpec(memory_space=pltpu.MemorySpace.VMEM),   # packed params
            pl.BlockSpec(memory_space=pltpu.MemorySpace.SMEM),   # fc bias scalar
        ],
        out_specs=pl.BlockSpec(memory_space=pltpu.MemorySpace.VMEM),
    )(img, packed_w, bfc)
    return out_wide[:, :1]                   # lane-dense store, slice in wrapper


def init_params(key):
    ks = jax.random.split(key, 4)
    wproj = jax.random.normal(ks[0], (C, FEAT_DIM), jnp.float32) * 0.1
    bproj = jax.random.normal(ks[1], (FEAT_DIM,), jnp.float32) * 0.01
    wfc = jax.random.normal(ks[2], (FEAT_DIM,), jnp.float32) * 0.1
    bfc = jax.random.normal(ks[3], (1,), jnp.float32) * 0.01

    slab = jnp.zeros((8, 128), jnp.float32)
    # fold the 1/(H*W) GAP scale into the projection weights (host-side, once)
    slab = slab.at[ROW_WPROJ:ROW_WPROJ + C, :FEAT_DIM].set(wproj / float(HW))
    slab = slab.at[ROW_BPROJ, :FEAT_DIM].set(bproj)
    slab = slab.at[ROW_WFC, :FEAT_DIM].set(wfc)
    return slab, bfc


def reference_forward(img_nchw, packed_w, bfc):
    """Pure-JAX reference with identical math (for a correctness check)."""
    b = img_nchw.shape[0]
    gap = jnp.sum(img_nchw.reshape(b, C, HW), axis=-1)            # [B, C]
    wproj = packed_w[ROW_WPROJ:ROW_WPROJ + C, :FEAT_DIM]          # scaled already
    bproj = packed_w[ROW_BPROJ, :FEAT_DIM]
    wfc = packed_w[ROW_WFC, :FEAT_DIM]
    feat = gap @ wproj + bproj                                    # [B, F]
    y = feat @ wfc[:, None] + bfc[0]                              # [B, 1]
    return jax.nn.sigmoid(y)


if __name__ == "__main__":
    key = jax.random.PRNGKey(0)
    k_img, k_par = jax.random.split(key, 2)

    img = jax.random.normal(k_img, (B, C, H, W), jnp.float32)     # NCHW like PyTorch
    packed_w, bfc = init_params(k_par)

    out = baseline_forward(img, packed_w, bfc)
    jax.block_until_ready(out)

    assert out.shape == (B, 1)
    assert bool(jnp.all(jnp.isfinite(out)))
    assert bool(jnp.all((out >= 0.0) & (out <= 1.0)))             # sigmoid range (BCE)

    ref = reference_forward(img, packed_w, bfc)
    assert bool(jnp.allclose(out, ref, atol=1e-5, rtol=1e-5))

    print("KERNEL_OK")
</pallas_src>

<mosaic_0001>
module attributes {stable_mosaic.version = 11 : i64} {
  func.func @baseline_kernel(%arg0: memref<2x768xf32, #tpu.memory_space<vmem>>, %arg1: memref<8x128xf32, #tpu.memory_space<vmem>>, %arg2: memref<1xf32, #tpu.memory_space<smem>>, %arg3: memref<2x128xf32, #tpu.memory_space<vmem>>) attributes {dimension_semantics = [], scalar_prefetch = 0 : i64, scratch_operands = 0 : i64, tpu.core_type = #tpu.core_type<tc>} {
    %c0 = arith.constant 0 : index
    %c0_0 = arith.constant 0 : index
    %0 = vector.load %arg0[%c0, %c0_0] : memref<2x768xf32, #tpu.memory_space<vmem>>, vector<2x768xf32>
    %c0_1 = arith.constant 0 : index
    %c0_2 = arith.constant 0 : index
    %1 = vector.load %arg1[%c0_1, %c0_2] : memref<8x128xf32, #tpu.memory_space<vmem>>, vector<8x128xf32>
    %2 = vector.extract_strided_slice %1 {offsets = [3, 0], sizes = [1, 128], strides = [1, 1]} : vector<8x128xf32> to vector<1x128xf32>
    %3 = vector.extract_strided_slice %0 {offsets = [0, 0], sizes = [2, 256], strides = [1, 1]} : vector<2x768xf32> to vector<2x256xf32>
    %cst = arith.constant dense<0.000000e+00> : vector<2xf32>
    %4 = vector.multi_reduction <add>, %3, %cst [1] : vector<2x256xf32> to vector<2xf32>
    %5 = vector.shape_cast %4 : vector<2xf32> to vector<2x1xf32>
    %6 = vector.extract_strided_slice %1 {offsets = [0, 0], sizes = [1, 128], strides = [1, 1]} : vector<8x128xf32> to vector<1x128xf32>
    %7 = vector.broadcast %5 : vector<2x1xf32> to vector<2x128xf32>
    %8 = vector.broadcast %6 : vector<1x128xf32> to vector<2x128xf32>
    %9 = arith.mulf %7, %8 : vector<2x128xf32>
    %10 = vector.broadcast %2 : vector<1x128xf32> to vector<2x128xf32>
    %11 = arith.addf %10, %9 : vector<2x128xf32>
    %12 = vector.extract_strided_slice %0 {offsets = [0, 256], sizes = [2, 256], strides = [1, 1]} : vector<2x768xf32> to vector<2x256xf32>
    %cst_3 = arith.constant dense<0.000000e+00> : vector<2xf32>
    %13 = vector.multi_reduction <add>, %12, %cst_3 [1] : vector<2x256xf32> to vector<2xf32>
    %14 = vector.shape_cast %13 : vector<2xf32> to vector<2x1xf32>
    %15 = vector.extract_strided_slice %1 {offsets = [1, 0], sizes = [1, 128], strides = [1, 1]} : vector<8x128xf32> to vector<1x128xf32>
    %16 = vector.broadcast %14 : vector<2x1xf32> to vector<2x128xf32>
    %17 = vector.broadcast %15 : vector<1x128xf32> to vector<2x128xf32>
    %18 = arith.mulf %16, %17 : vector<2x128xf32>
    %19 = arith.addf %11, %18 : vector<2x128xf32>
    %20 = vector.extract_strided_slice %0 {offsets = [0, 512], sizes = [2, 256], strides = [1, 1]} : vector<2x768xf32> to vector<2x256xf32>
    %cst_4 = arith.constant dense<0.000000e+00> : vector<2xf32>
    %21 = vector.multi_reduction <add>, %20, %cst_4 [1] : vector<2x256xf32> to vector<2xf32>
    %22 = vector.shape_cast %21 : vector<2xf32> to vector<2x1xf32>
    %23 = vector.extract_strided_slice %1 {offsets = [2, 0], sizes = [1, 128], strides = [1, 1]} : vector<8x128xf32> to vector<1x128xf32>
    %24 = vector.broadcast %22 : vector<2x1xf32> to vector<2x128xf32>
    %25 = vector.broadcast %23 : vector<1x128xf32> to vector<2x128xf32>
    %26 = arith.mulf %24, %25 : vector<2x128xf32>
    %27 = arith.addf %19, %26 : vector<2x128xf32>
    %28 = vector.extract_strided_slice %1 {offsets = [4, 0], sizes = [1, 128], strides = [1, 1]} : vector<8x128xf32> to vector<1x128xf32>
    %29 = vector.broadcast %28 : vector<1x128xf32> to vector<2x128xf32>
    %30 = arith.mulf %27, %29 : vector<2x128xf32>
    %cst_5 = arith.constant dense<0.000000e+00> : vector<2xf32>
    %31 = vector.multi_reduction <add>, %30, %cst_5 [1] : vector<2x128xf32> to vector<2xf32>
    %32 = vector.shape_cast %31 : vector<2xf32> to vector<2x1xf32>
    %c0_6 = arith.constant 0 : index
    %33 = memref.load %arg2[%c0_6] : memref<1xf32, #tpu.memory_space<smem>>
    %34 = vector.broadcast %33 : f32 to vector<2x1xf32>
    %35 = arith.addf %32, %34 : vector<2x1xf32>
    %36 = arith.negf %35 : vector<2x1xf32>
    %37 = math.exp %36 : vector<2x1xf32>
    %cst_7 = arith.constant 1.000000e+00 : f32
    %38 = vector.broadcast %cst_7 : f32 to vector<2x1xf32>
    %39 = arith.addf %38, %37 : vector<2x1xf32>
    %40 = arith.divf %38, %39 : vector<2x1xf32>
    %41 = vector.shape_cast %40 : vector<2x1xf32> to vector<2x1xf32>
    %42 = vector.broadcast %41 : vector<2x1xf32> to vector<2x128xf32>
    %c0_8 = arith.constant 0 : index
    %c0_9 = arith.constant 0 : index
    %43 = vector.load %arg3[%c0_8, %c0_9] : memref<2x128xf32, #tpu.memory_space<vmem>>, vector<2x128xf32>
    tpu.vector_store %arg3[%c0_8, %c0_9], %42 {strides = array<i32>} : memref<2x128xf32, #tpu.memory_space<vmem>>, vector<2x128xf32>,
    return
  }
}

</mosaic_0001>

<llo_original>
// kernel: tpu_custom_call.1
$region0: #{tpu_custom_call.1}
  #allocation0 [shape = 'u32[]', space=smem, size = 0x4, offset = 0x4, fixed_abs, tag = 'smem constant byte address 0x4 - core index']
  #allocation1 [shape = 'u32[144,128]{1,0:T(1,128)}', space=vmem, size = 0x12000, scoped, tag = 'internal scratch']
  #allocation2 [shape = 'f32[1]{0:T(128)S(6)}', space=smem, size = 0x200, scoped, tag = 'scoped memory for tpu_custom_call.1']
  %s0 = inlined_call_operand.hbm [shape: f32[2,768], index: 0, kind: input, shape index: {}]
  %s1 = inlined_call_operand.hbm [shape: f32[8,128], index: 1, kind: input, shape index: {}]
  %s2 = inlined_call_operand.<no memory space> [shape: f32[1], index: 2, kind: input, shape index: {}]
  %s3 = inlined_call_operand.hbm [shape: f32[2,128], index: 3, kind: output, shape index: {}]
  %s4 = sld [smem:[#allocation0]]
  $region30: #{tpu_custom_call.1} parent=0
    _
  %s6 = ssub.s32 1, %s4
  %s7 = scalar_select 0, %s6, %s4
  %8 = sst [smem:[#allocation2]] %s2
  $region1: #{tpu_custom_call.1} parent=0
    #allocation3 [shape = 'u8[6144]{0}', space=vmem, size = 0x1800, scoped, tag = 'input window, operand 0, single buffered']
    #allocation4 [shape = 's32[1]{0}', space=sflag, size = 0x4, scoped, tag = 'scoped memory for tpu_custom_call.1']
    #allocation5 [shape = 's32[1]{0}', space=sflag, size = 0x4, scoped, tag = 'scoped memory for tpu_custom_call.1']
    #allocation6 [shape = 'u8[4096]{0}', space=vmem, size = 0x1000, scoped, tag = 'input window, operand 1, single buffered']
    #allocation7 [shape = 's32[1]{0}', space=sflag, size = 0x4, scoped, tag = 'scoped memory for tpu_custom_call.1']
    #allocation8 [shape = 'u8[1024]{0}', space=vmem, size = 0x400, scoped, tag = 'output window, operand 0, single buffered']
    %9 = vsyncpa [#allocation4], 0
    %10 = vsyncpa [#allocation7], 0
    %11 = vsyncpa [#allocation5], 0
    // Predicated region
    $region2: #{tpu_custom_call.1} parent=1 // pred_check
      _
    $region3: #{tpu_custom_call.1} parent=1 // pred_check_branch
      %13 = sbr.rel (0) target = $region5
    $region4: #{tpu_custom_call.1} parent=1 // pred_region
      %s15 = ssub.s32 192, 192
      %16 = vsyncadd [#allocation4], %s15
      %s18 = sshll.u32 [#allocation3], 4
      %s19 = int_to_ptr.vmem [resolvable:$true] %s18
      %21 = dma.hbm_to_vmem [thread:$0]  %s0, 192, %s19, [#allocation4]
    $region5: #{tpu_custom_call.1} parent=1 // pred_fallthru
      _
    // Predicated region
    $region6: #{tpu_custom_call.1} parent=1 // pred_check
      _
    $region7: #{tpu_custom_call.1} parent=1 // pred_check_branch
      %23 = sbr.rel (0) target = $region9
    $region8: #{tpu_custom_call.1} parent=1 // pred_region
      %s25 = ssub.s32 128, 128
      %26 = vsyncadd [#allocation7], %s25
      %s28 = sshll.u32 [#allocation6], 4
      %s29 = int_to_ptr.vmem [resolvable:$true] %s28
      %31 = dma.hbm_to_vmem [thread:$0]  %s1, 128, %s29, [#allocation7]
    $region9: #{tpu_custom_call.1} parent=1 // pred_fallthru
      _
    // Predicated region
    $region10: #{tpu_custom_call.1} parent=1 // pred_check
      _
    $region11: #{tpu_custom_call.1} parent=1 // pred_check_branch
      %33 = sbr.rel (0) target = $region13
    $region12: #{tpu_custom_call.1} parent=1 // pred_region
      _
    $region13: #{tpu_custom_call.1} parent=1 // pred_fallthru
      _
    // Predicated region
    $region14: #{tpu_custom_call.1} parent=1 // pred_check
      _
    $region15: #{tpu_custom_call.1} parent=1 // pred_check_branch
      %35 = sbr.rel (0) target = $region17
    $region16: #{tpu_custom_call.1} parent=1 // pred_region
      %36 = dma.done [#allocation4], 192
    $region17: #{tpu_custom_call.1} parent=1 // pred_fallthru
      _
    // Predicated region
    $region18: #{tpu_custom_call.1} parent=1 // pred_check
      _
    $region19: #{tpu_custom_call.1} parent=1 // pred_check_branch
      %38 = sbr.rel (0) target = $region21
    $region20: #{tpu_custom_call.1} parent=1 // pred_region
      %39 = dma.done [#allocation7], 128
    $region21: #{tpu_custom_call.1} parent=1 // pred_fallthru
      _
    %v40 = vld [vmem:[#allocation3] sm:$0xff]
    %v41 = vld [vmem:[#allocation3 + $0x8] sm:$0xf]
    %v42 = vld [vmem:[#allocation6] sm:$0xff]
    %v45 = vunpack.c.l.s4 1983009808
    %v46 = vunpack.c.0.s8 %v45
    %v47 = vlaneseq
    %v48 = vshrl.u32 %v47, 7
    %v49 = vsub.s32 %v46, %v48
    %v50 = vrot.slane %v40, %v49
    %v51 = vcombine.high %v50, %v50
    %vm54 = vcmask 1041408
    %v55 = vsel %vm54, %v50, 0.0
    %v56 = vsel %vm54, %v51, 0.0
    %v57 = vadd.f32 %v55, %v56
    %58 = vadd.xlane.f32.xlu0 %v57
    %v59 = vpop.xlane.xlu0 %58
    %v60 = vlaneseq
    %v61 = vshrl.u32 %v60, 7
    %v62 = vsub.s32 0, %v61
    %v63 = vrot.slane %v42, %v62
    %v64 = vmul.f32 %v59, %v63
    %v65 = vlaneseq
    %v66 = vshrl.u32 %v65, 7
    %v67 = vsub.s32 3, %v66
    %v68 = vrot.slane %v42, %v67
    %v69 = vadd.f32 %v68, %v64
    %v70 = vcombine.high %v40, %v40
    %v72 = vunpack.c.l.s4 1983009808
    %v73 = vunpack.c.0.s8 %v72
    %v74 = vlaneseq
    %v75 = vshrl.u32 %v74, 7
    %v76 = vsub.s32 %v73, %v75
    %v77 = vrot.slane %v70, %v76
    %v78 = vcombine.high %v77, %v77
    %v81 = vsel %vm54, %v77, 0.0
    %v82 = vsel %vm54, %v78, 0.0
    %v83 = vadd.f32 %v81, %v82
    %84 = vadd.xlane.f32.xlu0 %v83
    %v85 = vpop.xlane.xlu0 %84
    %v86 = vlaneseq
    %v87 = vshrl.u32 %v86, 7
    %v88 = vsub.s32 1, %v87
    %v89 = vrot.slane %v42, %v88
    %v90 = vmul.f32 %v85, %v89
    %v91 = vadd.f32 %v69, %v90
    %v94 = vunpack.c.l.s4 1983009808
    %v95 = vunpack.c.0.s8 %v94
    %v96 = vlaneseq
    %v97 = vshrl.u32 %v96, 7
    %v98 = vsub.s32 %v95, %v97
    %v99 = vrot.slane %v41, %v98
    %v100 = vcombine.high %v99, %v99
    %v103 = vsel %vm54, %v99, 0.0
    %v104 = vsel %vm54, %v100, 0.0
    %v105 = vadd.f32 %v103, %v104
    %106 = vadd.xlane.f32.xlu0 %v105
    %v107 = vpop.xlane.xlu0 %106
    %v108 = vlaneseq
    %v109 = vshrl.u32 %v108, 7
    %v110 = vsub.s32 2, %v109
    %v111 = vrot.slane %v42, %v110
    %v112 = vmul.f32 %v107, %v111
    %v113 = vadd.f32 %v91, %v112
    %v114 = vlaneseq
    %v115 = vshrl.u32 %v114, 7
    %v116 = vsub.s32 4, %v115
    %v117 = vrot.slane %v42, %v116
    %v118 = vmul.f32 %v113, %v117
    %v119 = vsel %vm54, %v118, 0.0
    %120 = vadd.xlane.f32.xlu0 %v119
    %v121 = vpop.xlane.xlu0 %120
    %s122 = sld [smem:[#allocation2]]
    %v123 = vstv %s122
    %v124 = vadd.f32 %v121, %v123
    %v125 = vxor.u32 %v124, 2147483648
    %v126 = vmul.f32 %v125, 1.442695
    %v127 = vpow.pop %v126
    %v128 = vadd.f32 %v127, 1.0
    %v129 = vrcp.pop %v128
    %v130 = vmul.f32 1.0, %v129
    %131 = vst [vmem:[#allocation8] sm:$0x3] %v130
    // Predicated region
    $region22: #{tpu_custom_call.1} parent=1 // pred_check
      _
    $region23: #{tpu_custom_call.1} parent=1 // pred_check_branch
      %133 = sbr.rel (0) target = $region25
    $region24: #{tpu_custom_call.1} parent=1 // pred_region
      %s135 = ssub.s32 32, 32
      %136 = vsyncadd [#allocation5], %s135
      %s138 = sshll.u32 [#allocation8], 4
      %s139 = int_to_ptr.vmem [resolvable:$true] %s138
      %141 = dma.vmem_to_hbm [thread:$0]  %s139, 32, %s3, [#allocation5]
    $region25: #{tpu_custom_call.1} parent=1 // pred_fallthru
      _
    // Predicated region
    $region26: #{tpu_custom_call.1} parent=1 // pred_check
      _
    $region27: #{tpu_custom_call.1} parent=1 // pred_check_branch
      %143 = sbr.rel (0) target = $region29
    $region28: #{tpu_custom_call.1} parent=1 // pred_region
      %144 = dma.done [#allocation5], 32
    $region29: #{tpu_custom_call.1} parent=1 // pred_fallthru
      _
    %145 = vsyncpa [#allocation4], 1
    %146 = vsyncpa [#allocation7], 1
    %147 = vsyncpa [#allocation5], 1

</llo_original>
